<compile_context>
chip_gen: v7x
topology: tpu7x:2x2x1
jax: 0.10.0
libtpu: 0.0.40
codegen_flags: <defaults>
</compile_context>

<pallas_src>
import functools

import jax
import jax.numpy as jnp
from jax.experimental import pallas as pl
from jax.experimental.pallas import tpu as pltpu


def _round_up(v, m):
    return ((v + m - 1) // m) * m


def _vmem_budgets():
    """(tile-selection budget, Mosaic scoped-VMEM limit) in bytes, by chip gen."""
    try:
        cap = pltpu.get_tpu_info().vmem_capacity_bytes
    except Exception:  # pragma: no cover - info query unavailable
        cap = 0
    if cap >= 96 * 1024 * 1024:
        # v5e / v6e: 128 MiB physical VMEM per TensorCore.
        return 72 * 1024 * 1024, 96 * 1024 * 1024
    # v7x (64 MiB physical) or unknown: stay conservative.
    return 36 * 1024 * 1024, 48 * 1024 * 1024


def _pick_tn(out_dim, hidden, b_pad, embed_dim, itemsizes, budget_bytes, max_tn):
    """Output-tile width (lane dim).

    Returns out_dim itself for small outputs (single full-width tile), else a
    multiple of 128 chosen so that (a) the double/triple-buffered working set
    fits `budget_bytes` and (b) the grid has at least 2 steps (megacore).
    The grid uses cdiv, so tn does not have to divide out_dim.
    """
    x_isz, w1_isz, w2_isz, out_isz, scale_isz = itemsizes

    if out_dim < 256:
        # Single full-width tile; also handles out_dim not a multiple of 128.
        return out_dim

    # Grid-invariant blocks (x, w1) are still double-buffered by the pipeline.
    fixed = 2 * (b_pad * embed_dim * x_isz + embed_dim * hidden * w1_isz)
    # w2 column tile may be triple-buffered (pl.Buffered(3)); output tile and
    # per-column scales are double-buffered.
    per_tn = 3 * hidden * w2_isz + 2 * b_pad * out_isz + 2 * scale_isz

    avail = max(budget_bytes - fixed, 0)
    tn_fit = (avail // per_tn) // 128 * 128
    # Cap so the (parallel) grid has at least 2 steps: both TensorCores of a
    # megacore part stream w2; costs one ~0.35us step on single-TC parts.
    upper = min(max_tn, _round_up(pl.cdiv(out_dim, 2), 128))
    return int(max(128, min(tn_fit, upper)))


def _prompter_kernel(x_ref, w1_ref, w2_ref, o_ref):
    """One grid step computes one (b_pad, tn) tile of relu(x @ w1) @ w2."""
    h = jnp.maximum(
        jnp.dot(x_ref[...], w1_ref[...], preferred_element_type=jnp.float32),
        0.0,
    )
    # Note: when w2 is bf16 the ReLU activations are downcast to bf16 before
    # the second matmul (f32 accumulation); this adds rounding relative to the
    # all-f32 PyTorch reference and is covered by the bf16 test tolerance.
    o_ref[...] = jnp.dot(
        h.astype(w2_ref.dtype), w2_ref[...], preferred_element_type=jnp.float32
    ).astype(o_ref.dtype)


def _prompter_kernel_quant(x_ref, w1_ref, w2_ref, scale_ref, o_ref):
    """Quantized-w2 variant: w2 is int8, per-column f32 scales, dequant in VMEM."""
    h = jnp.maximum(
        jnp.dot(x_ref[...], w1_ref[...], preferred_element_type=jnp.float32),
        0.0,
    )
    acc = jnp.dot(
        h, w2_ref[...].astype(jnp.float32), preferred_element_type=jnp.float32
    )
    o_ref[...] = (acc * scale_ref[...]).astype(o_ref.dtype)


@functools.partial(
    jax.jit,
    static_argnames=("num_layers", "prompt_length", "model_dim", "max_tn", "training"),
)
def prompter_forward(x, w1, w2, w2_scale=None, *, num_layers, prompt_length,
                     model_dim, max_tn=8192, training=False):
    """x: (B, embed_dim); w1: (embed_dim, hidden); w2: (hidden, out_dim).

    If `w2_scale` (shape (1, out_dim), f32) is given, w2 is expected to be int8
    and is dequantized per-column inside the kernel.
    """
    if training:
        # TODO(synk): training-mode dropout (pltpu.prng_seed/prng_random_bits
        # masking) is not implemented; forward matches the eval-mode module.
        raise NotImplementedError("Prompter Pallas kernel only supports eval mode")

    B, embed_dim = x.shape
    hidden = w1.shape[1]
    out_dim = w2.shape[1]
    assert w1.shape[0] == embed_dim and w2.shape[0] == hidden
    assert out_dim == model_dim * num_layers * prompt_length

    quantized = w2_scale is not None
    if quantized:
        assert w2_scale.shape == (1, out_dim)

    # Dtype-aware batch pad: pad to a full packed sublane tile of the narrowest
    # dtype that feeds the MXU / stores (f32 -> 8 rows, bf16 -> 16) so packed
    # vreg stores are unmasked.  Skip padding entirely when already aligned.
    mm_w2_dtype = jnp.float32 if quantized else w2.dtype
    min_isz = min(jnp.dtype(x.dtype).itemsize, jnp.dtype(mm_w2_dtype).itemsize)
    sublanes = 8 * max(1, 4 // min_isz)
    b_pad = max(sublanes, _round_up(B, sublanes))
    x_p = x if b_pad == B else jnp.pad(x, ((0, b_pad - B), (0, 0)))

    budget_bytes, vmem_limit = _vmem_budgets()
    itemsizes = (
        jnp.dtype(x.dtype).itemsize,
        jnp.dtype(w1.dtype).itemsize,
        jnp.dtype(w2.dtype).itemsize,
        jnp.dtype(x.dtype).itemsize,      # output dtype == x dtype
        4 if quantized else 0,            # per-column scale stream
    )
    tn = _pick_tn(out_dim, hidden, b_pad, embed_dim, itemsizes,
                  budget_bytes=budget_bytes, max_tn=max_tn)
    n_tiles = int(pl.cdiv(out_dim, tn))
    grid = (n_tiles,)

    # Keep three w2 column-tile buffers in flight when the grid is long enough:
    # per-step compute is tiny, so a deeper pipeline keeps two strided w2 DMAs
    # outstanding and hides issue latency.  (VMEM budget above accounts for 3.)
    if n_tiles >= 3:
        w2_spec = pl.BlockSpec((hidden, tn), lambda j: (0, j),
                               pipeline_mode=pl.Buffered(3))
    else:
        w2_spec = pl.BlockSpec((hidden, tn), lambda j: (0, j))

    in_specs = [
        pl.BlockSpec((b_pad, embed_dim), lambda j: (0, 0)),   # x  (grid-invariant)
        pl.BlockSpec((embed_dim, hidden), lambda j: (0, 0)),  # w1 (grid-invariant)
        w2_spec,                                              # w2 column tile
    ]
    args = [x_p, w1, w2]
    kernel = _prompter_kernel
    if quantized:
        in_specs.append(pl.BlockSpec((1, tn), lambda j: (0, j)))  # per-col scales
        args.append(w2_scale)
        kernel = _prompter_kernel_quant

    out_itemsize = jnp.dtype(x.dtype).itemsize
    flops = 2 * b_pad * (embed_dim * hidden + hidden * out_dim)
    bytes_accessed = (
        x_p.size * jnp.dtype(x.dtype).itemsize
        + w1.size * jnp.dtype(w1.dtype).itemsize
        + w2.size * jnp.dtype(w2.dtype).itemsize
        + (w2_scale.size * jnp.dtype(w2_scale.dtype).itemsize if quantized else 0)
        + b_pad * out_dim * out_itemsize
    )

    out_flat = pl.pallas_call(
        kernel,
        out_shape=jax.ShapeDtypeStruct((b_pad, out_dim), x.dtype),
        grid_spec=pltpu.PrefetchScalarGridSpec(
            num_scalar_prefetch=0,
            grid=grid,
            in_specs=in_specs,
            out_specs=pl.BlockSpec((b_pad, tn), lambda j: (0, j)),
        ),
        compiler_params=pltpu.CompilerParams(
            # No cross-iteration state -> the column axis can be sharded across
            # TensorCores on megacore parts; harmless elsewhere.
            dimension_semantics=("parallel",),
            vmem_limit_bytes=vmem_limit,
        ),
        cost_estimate=pl.CostEstimate(
            flops=flops, transcendentals=0, bytes_accessed=bytes_accessed
        ),
    )(*args)

    if b_pad != B:
        out_flat = out_flat[:B]
    return out_flat.reshape(B, num_layers, prompt_length, model_dim)


def quantize_w2_per_column(w2):
    """Symmetric per-column int8 quantization for the second linear's weights."""
    amax = jnp.max(jnp.abs(w2), axis=0, keepdims=True)
    scale = jnp.where(amax > 0, amax / 127.0, 1.0).astype(jnp.float32)
    q = jnp.clip(jnp.round(w2 / scale), -127, 127).astype(jnp.int8)
    return q, scale


def _ref_forward(x, w1, w2, num_layers, prompt_length, model_dim):
    out = jnp.maximum(x @ w1, 0.0) @ w2
    return out.reshape(x.shape[0], num_layers, prompt_length, model_dim)


if __name__ == "__main__":
    key = jax.random.PRNGKey(0)

    # --- Config A: tiny config consistent with the module's __init__ ---------
    batch, embed_dim, hidden = 2, 32, 64
    model_dim, num_layers, prompt_length = 32, 2, 4
    out_dim = model_dim * num_layers * prompt_length          # 256

    kx, k1, k2, kxb, k1b, k2b = jax.random.split(key, 6)
    x = jax.random.normal(kx, (batch, embed_dim), dtype=jnp.float32)
    w1 = jax.random.normal(k1, (embed_dim, hidden), dtype=jnp.float32) * 0.05
    w2 = jax.random.normal(k2, (hidden, out_dim), dtype=jnp.float32) * 0.05
    ref = _ref_forward(x, w1, w2, num_layers, prompt_length, model_dim)

    # f32 weights: exact parity with the PyTorch reference math.
    out = prompter_forward(x, w1, w2, num_layers=num_layers,
                           prompt_length=prompt_length, model_dim=model_dim)
    jax.block_until_ready(out)
    assert out.shape == (batch, num_layers, prompt_length, model_dim)
    assert jnp.allclose(out, ref, atol=1e-5, rtol=1e-5)

    # bf16 weights (halves streamed-weight HBM traffic; f32 accumulation).
    out_bf16 = prompter_forward(x, w1.astype(jnp.bfloat16), w2.astype(jnp.bfloat16),
                                num_layers=num_layers, prompt_length=prompt_length,
                                model_dim=model_dim)
    jax.block_until_ready(out_bf16)
    assert jnp.allclose(out_bf16, ref, atol=5e-2, rtol=5e-2)

    # int8 w2 with per-column scales (quarters the dominant w2 stream;
    # dequantized in VMEM so no narrow-dtype MXU path is required).
    w2_q, w2_s = quantize_w2_per_column(w2)
    out_q = prompter_forward(x, w1, w2_q, w2_s, num_layers=num_layers,
                             prompt_length=prompt_length, model_dim=model_dim)
    jax.block_until_ready(out_q)
    assert jnp.allclose(out_q, ref, atol=2e-2, rtol=2e-2)

    # --- Config B: out_dim not a multiple of the tile (masked last tile),
    #     grid >= 3 (exercises pl.Buffered(3) on w2), batch not multiple of 8.
    batch_b, embed_b, hidden_b = 3, 48, 96
    model_dim_b, layers_b, plen_b = 40, 4, 2
    out_dim_b = model_dim_b * layers_b * plen_b                # 320
    xb = jax.random.normal(kxb, (batch_b, embed_b), dtype=jnp.float32)
    w1b = jax.random.normal(k1b, (embed_b, hidden_b), dtype=jnp.float32) * 0.05
    w2b = jax.random.normal(k2b, (hidden_b, out_dim_b), dtype=jnp.float32) * 0.05
    refb = _ref_forward(xb, w1b, w2b, layers_b, plen_b, model_dim_b)

    outb = prompter_forward(xb, w1b, w2b, num_layers=layers_b,
                            prompt_length=plen_b, model_dim=model_dim_b,
                            max_tn=128)   # force grid=3 at this tiny size
    jax.block_until_ready(outb)
    assert outb.shape == (batch_b, layers_b, plen_b, model_dim_b)
    assert jnp.allclose(outb, refb, atol=1e-4, rtol=1e-5)

    print("KERNEL_OK")
</pallas_src>

<mosaic_0001>
module attributes {stable_mosaic.version = 11 : i64} {
  func.func @_prompter_kernel(%arg0: i32, %arg1: memref<8x32xf32, #tpu.memory_space<vmem>>, %arg2: memref<32x64xf32, #tpu.memory_space<vmem>>, %arg3: memref<64x128xf32, #tpu.memory_space<vmem>>, %arg4: memref<8x128xf32, #tpu.memory_space<vmem>>) attributes {dimension_semantics = [#tpu.dimension_semantics<parallel>], iteration_bounds = array<i64: 2>, scalar_prefetch = 0 : i64, scratch_operands = 0 : i64, tpu.core_type = #tpu.core_type<tc>, window_params = [{pipeline_mode = #tpu.pipeline_mode<synchronous>, transform_indices = @transform_0, window_bounds = array<i64: 8, 32>}, {pipeline_mode = #tpu.pipeline_mode<synchronous>, transform_indices = @transform_1, window_bounds = array<i64: 32, 64>}, {transform_indices = @transform_2, window_bounds = array<i64: 64, 128>}, {transform_indices = @transform_3, window_bounds = array<i64: 8, 128>}]} {
    %c0 = arith.constant 0 : index
    %c0_0 = arith.constant 0 : index
    %0 = vector.load %arg1[%c0, %c0_0] : memref<8x32xf32, #tpu.memory_space<vmem>>, vector<8x32xf32>
    %c0_1 = arith.constant 0 : index
    %c0_2 = arith.constant 0 : index
    %1 = vector.load %arg2[%c0_1, %c0_2] : memref<32x64xf32, #tpu.memory_space<vmem>>, vector<32x64xf32>
    %cst = arith.constant dense<0.000000e+00> : vector<8x64xf32>
    %2 = tpu.matmul %0, %1, %cst {dimension_numbers = #tpu.dot_dimension_numbers<[1], [0], [0], [1], [0, 0, 1, 1], [], []>} : vector<8x32xf32>, vector<32x64xf32>, vector<8x64xf32> -> vector<8x64xf32>
    %cst_3 = arith.constant 0.000000e+00 : f32
    %3 = vector.broadcast %cst_3 : f32 to vector<8x64xf32>
    %4 = arith.maximumf %2, %3 : vector<8x64xf32>
    %c0_4 = arith.constant 0 : index
    %c0_5 = arith.constant 0 : index
    %5 = vector.load %arg3[%c0_4, %c0_5] : memref<64x128xf32, #tpu.memory_space<vmem>>, vector<64x128xf32>
    %cst_6 = arith.constant dense<0.000000e+00> : vector<8x128xf32>
    %6 = tpu.matmul %4, %5, %cst_6 {dimension_numbers = #tpu.dot_dimension_numbers<[1], [0], [0], [1], [0, 0, 1, 1], [], []>} : vector<8x64xf32>, vector<64x128xf32>, vector<8x128xf32> -> vector<8x128xf32>
    %c0_7 = arith.constant 0 : index
    %c0_8 = arith.constant 0 : index
    %7 = vector.load %arg4[%c0_7, %c0_8] : memref<8x128xf32, #tpu.memory_space<vmem>>, vector<8x128xf32>
    tpu.vector_store %arg4[%c0_7, %c0_8], %6 {strides = array<i32>} : memref<8x128xf32, #tpu.memory_space<vmem>>, vector<8x128xf32>,
    return
  }
  func.func @transform_0(%arg0: i32) -> (i32, i32) {
    %c0_i32 = arith.constant 0 : i32
    %c0_i32_0 = arith.constant 0 : i32
    %c0_i32_1 = arith.constant 0 : i32
    return %c0_i32, %c0_i32_0 : i32, i32
  }
  func.func @transform_1(%arg0: i32) -> (i32, i32) {
    %c0_i32 = arith.constant 0 : i32
    %c0_i32_0 = arith.constant 0 : i32
    %c0_i32_1 = arith.constant 0 : i32
    return %c0_i32, %c0_i32_0 : i32, i32
  }
  func.func @transform_2(%arg0: i32) -> (i32, i32) {
    %c0_i32 = arith.constant 0 : i32
    %c0_i32_0 = arith.constant 0 : i32
    return %c0_i32, %arg0 : i32, i32
  }
  func.func @transform_3(%arg0: i32) -> (i32, i32) {
    %c0_i32 = arith.constant 0 : i32
    %c0_i32_0 = arith.constant 0 : i32
    return %c0_i32, %arg0 : i32, i32
  }
}

</mosaic_0001>

<llo_original>
// kernel: prompter_forward.1
$region0: #{prompter_forward.1}
  #allocation0 [shape = 'u32[]', space=smem, size = 0x4, offset = 0x4, fixed_abs, tag = 'smem constant byte address 0x4 - core index']
  #allocation1 [shape = 'u32[144,128]{1,0:T(1,128)}', space=vmem, size = 0x12000, scoped, tag = 'internal scratch']
  %s0 = inlined_call_operand.vmem [shape: f32[8,32], index: 0, kind: input, shape index: {}]
  %s1 = inlined_call_operand.hbm [shape: f32[32,64], index: 1, kind: input, shape index: {}]
  %s2 = inlined_call_operand.hbm [shape: f32[64,256], index: 2, kind: input, shape index: {}]
  %s3 = inlined_call_operand.vmem [shape: f32[8,256], index: 3, kind: output, shape index: {}]
  %s4 = sld [smem:[#allocation0]]
  $region53: #{prompter_forward.1} parent=0
    _
  %s6 = ssub.s32 1, %s4
  %s7 = scalar_select 0, %s6, %s4
  $region1: #{prompter_forward.1} parent=0
    #allocation2 [shape = 'u8[16384]{0}', space=vmem, size = 0x4000, scoped, tag = 'input window, operand 1, single buffered']
    #allocation3 [shape = 's32[2]{0}', space=sflag, size = 0x8, scoped, tag = 'scoped memory for prompter_forward.1']
    #allocation4 [shape = 'u8[65536]{0}', space=vmem, size = 0x10000, scoped, tag = 'input window, operand 2']
    #allocation5 [shape = 's32[2]{0}', space=sflag, size = 0x8, scoped, tag = 'scoped memory for prompter_forward.1']
    %8 = vsyncpa [#allocation3], 0
    %9 = vsyncpa [#allocation5], 0
    %s10 = scalar_lea.sflag [#allocation5], 1
    %11 = vsyncpa %s10, 0
    loop: start=0, step=1, limit=4
    $region2: #{prompter_forward.1} parent=1 // loop_pre_header
      _
    $region3: #{prompter_forward.1} parent=1 // loop_header
      %s13 = sphi 0, %s17
      %p14 = scmp.ge.s32.totalorder %s13, 4
      %s21 = sphi 0, %s21
      %s23 = sphi 0, %s21
      %s24 = sphi 0, %s23
      %s38 = sphi 0, %s24
      %s42 = sphi 0, %s42
      %s44 = sphi 0, %s42
      %s45 = sphi 0, %s44
      %s59 = sphi 0, %s45
      %s65 = sphi 0, %s67
      %s68 = sphi 0, %s65
      %s69 = sphi 0, %s68
      %s85 = sphi 0, %s69
      %s91 = sphi 0, %s93
      %s94 = sphi 0, %s91
      %s95 = sphi 0, %s94
      %s111 = sphi 0, %s95
    $region4: #{prompter_forward.1} parent=1 // loop_header_branch
      %16 = sbr.rel (%p14) target = $region8
    $region5: #{prompter_forward.1} parent=1 // loop_body
      %s18 = ssub.s32 %s13, 1
      %s19 = ssub.s32 %s13, 2
      %s20 = sadd.s32 %s13, 1
      %s22 = sadd.s32 %s21, 1
      %p25 = scmp.eq.s32.totalorder %s13, 1
      %p26 = scmp.ne.s32.totalorder %s21, %s23
      %p27 = scmp.eq.s32.totalorder %s13, 0
      %p28 = por %p26, %p27
      %p29 = scmp.ne.s32.totalorder %s21, %s23
      %p30 = scmp.eq.s32.totalorder %s18, 1
      %p31 = por %p29, %p30
      %p32 = scmp.ne.s32.totalorder %s23, %s24
      %p33 = scmp.eq.s32.totalorder %s18, 0
      %p34 = por %p32, %p33
      %p35 = scmp.ne.s32.totalorder %s23, %s24
      %p36 = scmp.eq.s32.totalorder %s19, 1
      %p37 = por %p35, %p36
      %p39 = scmp.ne.s32.totalorder %s24, %s38
      %p40 = scmp.eq.s32.totalorder %s19, 0
      %p41 = por %p39, %p40
      %s43 = sadd.s32 %s42, 1
      %p46 = scmp.eq.s32.totalorder %s13, 1
      %p47 = scmp.ne.s32.totalorder %s42, %s44
      %p48 = scmp.eq.s32.totalorder %s13, 0
      %p49 = por %p47, %p48
      %p50 = scmp.ne.s32.totalorder %s42, %s44
      %p51 = scmp.eq.s32.totalorder %s18, 1
      %p52 = por %p50, %p51
      %p53 = scmp.ne.s32.totalorder %s44, %s45
      %p54 = scmp.eq.s32.totalorder %s18, 0
      %p55 = por %p53, %p54
      %p56 = scmp.ne.s32.totalorder %s44, %s45
      %p57 = scmp.eq.s32.totalorder %s19, 1
      %p58 = por %p56, %p57
      %p60 = scmp.ne.s32.totalorder %s45, %s59
      %p61 = scmp.eq.s32.totalorder %s19, 0
      %p62 = por %p60, %p61
      %s63 = ssub.s32 %s13, %s20
      %p64 = scmp.eq.s32.totalorder %s63, 0
      %s66 = sadd.s32 %s65, 1
      %s67 = scalar_select %p64, %s65, %s66
      %p70 = pneg %p64
      %p71 = scmp.eq.s32.totalorder %s13, 1
      %p72 = por %p70, %p71
      %p73 = scmp.ne.s32.totalorder %s65, %s68
      %p74 = scmp.eq.s32.totalorder %s13, 0
      %p75 = por %p73, %p74
      %p76 = scmp.ne.s32.totalorder %s65, %s68
      %p77 = scmp.eq.s32.totalorder %s18, 1
      %p78 = por %p76, %p77
      %p79 = scmp.ne.s32.totalorder %s68, %s69
      %p80 = scmp.eq.s32.totalorder %s18, 0
      %p81 = por %p79, %p80
      %p82 = scmp.ne.s32.totalorder %s68, %s69
      %p83 = scmp.eq.s32.totalorder %s19, 1
      %p84 = por %p82, %p83
      %p86 = scmp.ne.s32.totalorder %s69, %s85
      %p87 = scmp.eq.s32.totalorder %s19, 0
      %p88 = por %p86, %p87
      %s89 = ssub.s32 %s13, %s20
      %p90 = scmp.eq.s32.totalorder %s89, 0
      %s92 = sadd.s32 %s91, 1
      %s93 = scalar_select %p90, %s91, %s92
      %p96 = pneg %p90
      %p97 = scmp.eq.s32.totalorder %s13, 1
      %p98 = por %p96, %p97
      %p99 = scmp.ne.s32.totalorder %s91, %s94
      %p100 = scmp.eq.s32.totalorder %s13, 0
      %p101 = por %p99, %p100
      %p102 = scmp.ne.s32.totalorder %s91, %s94
      %p103 = scmp.eq.s32.totalorder %s18, 1
      %p104 = por %p102, %p103
      %p105 = scmp.ne.s32.totalorder %s94, %s95
      %p106 = scmp.eq.s32.totalorder %s18, 0
      %p107 = por %p105, %p106
      %p108 = scmp.ne.s32.totalorder %s94, %s95
      %p109 = scmp.eq.s32.totalorder %s19, 1
      %p110 = por %p108, %p109
      %p112 = scmp.ne.s32.totalorder %s95, %s111
      %p113 = scmp.eq.s32.totalorder %s19, 0
      %p114 = por %p112, %p113
      %p115 = scmp.le.s32.totalorder 1, %s13
      %p116 = scmp.lt.s32.totalorder %s13, 3
      %p117 = pnand %p115, %p116
      %p118 = pneg %p117
      // Predicated region
      $region9: #{prompter_forward.1} parent=5 // pred_check
        _
      $region10: #{prompter_forward.1} parent=5 // pred_check_branch
        %120 = sbr.rel (%p117) target = $region12
      $region11: #{prompter_forward.1} parent=5 // pred_region
        %s121 = ssub.s32 %s13, 1
        // Predicated region
        $region13: #{prompter_forward.1} parent=11 // pred_check
          %p122 = pneg %p34
        $region14: #{prompter_forward.1} parent=11 // pred_check_branch
          %124 = sbr.rel (%p122) target = $region16
        $region15: #{prompter_forward.1} parent=11 // pred_region
          _
        $region16: #{prompter_forward.1} parent=11 // pred_fallthru
          _
        // Predicated region
        $region17: #{prompter_forward.1} parent=11 // pred_check
          %p125 = pneg %p55
        $region18: #{prompter_forward.1} parent=11 // pred_check_branch
          %127 = sbr.rel (%p125) target = $region20
        $region19: #{prompter_forward.1} parent=11 // pred_region
          %s129 = ssub.s32 512, 512
          %130 = vsyncadd [#allocation3], %s129
          %s131 = sshll.u32 [#allocation2], 4
          %s132 = int_to_ptr.vmem [resolvable:$true] %s131
          %137 = dma.hbm_to_vmem [thread:$0]  %s1, 512, %s132, [#allocation3], 128, 128, 8
        $region20: #{prompter_forward.1} parent=11 // pred_fallthru
          _
      $region12: #{prompter_forward.1} parent=5 // pred_fallthru
        _
      %p138 = scmp.lt.s32.totalorder %s13, 2
      // Predicated region
      $region21: #{prompter_forward.1} parent=5 // pred_check
        %p139 = pneg %p138
      $region22: #{prompter_forward.1} parent=5 // pred_check_branch
        %141 = sbr.rel (%p139) target = $region24
      $region23: #{prompter_forward.1} parent=5 // pred_region
        // Predicated region
        $region25: #{prompter_forward.1} parent=23 // pred_check
          %p142 = pneg %p75
        $region26: #{prompter_forward.1} parent=23 // pred_check_branch
          %144 = sbr.rel (%p142) target = $region28
        $region27: #{prompter_forward.1} parent=23 // pred_region
          %s145 = sand.u32 %s65, 1
          %s146 = scalar_lea.sflag [#allocation5], %s145
          %s147 = sand.u32 %s65, 1
          %s148 = smul.addr %s147, 64
          %s149 = scalar_lea.vmem [#allocation4], %s148
          %s151 = ssub.s32 1024, 1024
          %152 = vsyncadd %s146, %s151
          %s153 = smul.addr %s13, 128
          %s154 = scalar_lea.hbm %s2, %s153
          %s155 = sshll.u32 %s149, 4
          %s156 = int_to_ptr.vmem [resolvable:$true] %s155
          %161 = dma.hbm_to_vmem [thread:$0]  %s154, 1024, %s156, %s146, 256, 128, 8
        $region28: #{prompter_forward.1} parent=23 // pred_fallthru
          _
      $region24: #{prompter_forward.1} parent=5 // pred_fallthru
        _
      %p162 = scmp.le.s32.totalorder 1, %s13
      %p163 = scmp.lt.s32.totalorder %s13, 3
      %p164 = pnand %p162, %p163
      %p165 = pneg %p164
      // Predicated region
      $region29: #{prompter_forward.1} parent=5 // pred_check
        _
      $region30: #{prompter_forward.1} parent=5 // pred_check_branch
        %167 = sbr.rel (%p164) target = $region32
      $region31: #{prompter_forward.1} parent=5 // pred_region
        %s168 = ssub.s32 %s13, 1
        // Predicated region
        $region33: #{prompter_forward.1} parent=31 // pred_check
          %p169 = pneg %p55
        $region34: #{prompter_forward.1} parent=31 // pred_check_branch
          %171 = sbr.rel (%p169) target = $region36
        $region35: #{prompter_forward.1} parent=31 // pred_region
          %172 = dma.done [#allocation3], 512
        $region36: #{prompter_forward.1} parent=31 // pred_fallthru
          _
        %s173 = sand.u32 %s68, 1
        %s174 = scalar_lea.sflag [#allocation5], %s173
        %s175 = sand.u32 %s68, 1
        %s176 = smul.addr %s175, 64
        %s177 = scalar_lea.vmem [#allocation4], %s176
        // Predicated region
        $region37: #{prompter_forward.1} parent=31 // pred_check
          %p178 = pneg %p81
        $region38: #{prompter_forward.1} parent=31 // pred_check_branch
          %180 = sbr.rel (%p178) target = $region40
        $region39: #{prompter_forward.1} parent=31 // pred_region
          %181 = dma.done %s174, 1024
        $region40: #{prompter_forward.1} parent=31 // pred_fallthru
          _
        %p182 = pneg %p34
        %p183 = pneg %p31
        %p184 = pneg %p55
        %p185 = pneg %p52
        %s186 = sand.u32 %s68, 1
        %s187 = scalar_lea.sflag [#allocation5], %s186
        %s188 = sand.u32 %s68, 1
        %s189 = smul.addr %s188, 64
        %s190 = scalar_lea.vmem [#allocation4], %s189
        %p191 = pneg %p81
        %p192 = pneg %p78
        %p193 = pneg %p107
        %p194 = pneg %p104
        %p195 = scmp.lt.s32.totalorder %s18, 1
        %s196 = scalar_select %p195, %s18, 1
        %s197 = smul.addr %s196, 8
        %s198 = scalar_lea.vmem %s3, %s197
        %p199 = scmp.lt.s32.totalorder %s18, 1
        %s200 = scalar_select %p199, %s18, 1
        %s201 = smul.addr %s200, 8
        %s202 = scalar_lea.vmem %s3, %s201
        %v203 = vld [vmem:[%s0] sm:$0xff]
        %v204 = vld [vmem:[#allocation2] sm:$0xff]
        %v205 = vld [vmem:[#allocation2 + $0x8] sm:$0xff]
        %v206 = vld [vmem:[#allocation2 + $0x10] sm:$0xff]
        %v207 = vld [vmem:[#allocation2 + $0x18] sm:$0xff]
        %vm208 = vcmask 261120
        %v210 = vsel %vm208, %v203, 0
        %212 = vmatprep.subr.mxu0 0.0
        %213 = vmatpush1.msra.mxu0 %v204
        %214 = vmatprep.subr.mxu0 0.0
        %215 = vmatpush1.msra.mxu0 %v205
        %216 = vmatprep.subr.mxu0 0.0
        %217 = vmatpush1.msra.mxu0 %v206
        %218 = vmatprep.subr.mxu0 0.0
        %219 = vmatpush1.msra.mxu0 %v207
        %220 = vmatprep.subr.mxu0 0.0
        %221 = vmatpush1.msra.mxu0 0.0
        %222 = vmatprep.subr.mxu0 0.0
        %223 = vmatpush1.msra.mxu0 0.0
        %224 = vmatprep.subr.mxu0 0.0
        %225 = vmatpush1.msra.mxu0 0.0
        %226 = vmatprep.subr.mxu0 0.0
        %227 = vmatpush1.msra.mxu0 0.0
        %228 = vmatprep.subr.mxu0 0.0
        %229 = vmatpush1.msra.mxu0 0.0
        %230 = vmatprep.subr.mxu0 0.0
        %231 = vmatpush1.msra.mxu0 0.0
        %232 = vmatprep.subr.mxu0 0.0
        %233 = vmatpush1.msra.mxu0 0.0
        %234 = vmatprep.subr.mxu0 0.0
        %235 = vmatpush1.msra.mxu0 0.0
        %236 = vmatprep.subr.mxu0 0.0
        %237 = vmatpush1.msra.mxu0 0.0
        %238 = vmatprep.subr.mxu0 0.0
        %239 = vmatpush1.msra.mxu0 0.0
        %240 = vmatprep.subr.mxu0 0.0
        %241 = vmatpush1.msra.mxu0 0.0
        %242 = vmatprep.subr.mxu0 0.0
        %243 = vmatpush1.msra.mxu0 0.0
        %244 = vmatprep.subr.mxu0 0.0
        %245 = vmatpush1.msra.mxu0 0.0
        %246 = vmatprep.subr.mxu0 0.0
        %247 = vmatpush1.msra.mxu0 0.0
        %248 = vmatprep.subr.mxu0 0.0
        %249 = vmatpush1.msra.mxu0 0.0
        %250 = vmatprep.subr.mxu0 0.0
        %251 = vmatpush1.msra.mxu0 0.0
        %252 = vmatprep.subr.mxu0 0.0
        %253 = vmatpush1.msra.mxu0 0.0
        %254 = vmatprep.subr.mxu0 0.0
        %255 = vmatpush1.msra.mxu0 0.0
        %256 = vmatprep.subr.mxu0 0.0
        %257 = vmatpush1.msra.mxu0 0.0
        %258 = vmatprep.subr.mxu0 0.0
        %259 = vmatpush1.msra.mxu0 0.0
        %260 = vmatprep.subr.mxu0 0.0
        %261 = vmatpush1.msra.mxu0 0.0
        %262 = vmatprep.subr.mxu0 0.0
        %263 = vmatpush1.msra.mxu0 0.0
        %264 = vmatprep.subr.mxu0 0.0
        %265 = vmatpush1.msra.mxu0 0.0
        %266 = vmatprep.subr.mxu0 0.0
        %267 = vmatpush1.msra.mxu0 0.0
        %268 = vmatprep.subr.mxu0 0.0
        %269 = vmatpush1.msra.mxu0 0.0
        %270 = vmatprep.subr.mxu0 0.0
        %271 = vmatpush1.msra.mxu0 0.0
        %272 = vmatprep.subr.mxu0 0.0
        %273 = vmatpush1.msra.mxu0 0.0
        %274 = vmatprep.subr.mxu0 0.0
        %275 = vmatpush1.msra.mxu0 0.0
        %276 = vmatprep.mubr.f32.mxu0 0.0
        %277 = vmatmul.mubr.f32.gmra.mrb[0].mxu0 %v210
        %v278 = vpop.f32.mrb[0].mxu0
        %v279 = vadd.f32 0.0, %v278
        %v280 = vpop.f32.mrb[0].mxu0
        %281 = vdwg.mxu0
        %v282 = vmax.f32 %v279, 0.0
        %v283 = vld [vmem:[%s177] sm:$0xff]
        %v284 = vld [vmem:[%s177 + $0x8] sm:$0xff]
        %v285 = vld [vmem:[%s177 + $0x10] sm:$0xff]
        %v286 = vld [vmem:[%s177 + $0x18] sm:$0xff]
        %v287 = vld [vmem:[%s177 + $0x20] sm:$0xff]
        %v288 = vld [vmem:[%s177 + $0x28] sm:$0xff]
        %v289 = vld [vmem:[%s177 + $0x30] sm:$0xff]
        %v290 = vld [vmem:[%s177 + $0x38] sm:$0xff]
        %vm291 = vcmask 523264
        %v293 = vsel %vm291, %v282, 0
        %295 = vmatprep.subr.mxu0 0.0
        %296 = vmatpush1.msra.mxu0 %v283
        %297 = vmatprep.subr.mxu0 0.0
        %298 = vmatpush1.msra.mxu0 %v284
        %299 = vmatprep.subr.mxu0 0.0
        %300 = vmatpush1.msra.mxu0 %v285
        %301 = vmatprep.subr.mxu0 0.0
        %302 = vmatpush1.msra.mxu0 %v286
        %303 = vmatprep.subr.mxu0 0.0
        %304 = vmatpush1.msra.mxu0 %v287
        %305 = vmatprep.subr.mxu0 0.0
        %306 = vmatpush1.msra.mxu0 %v288
        %307 = vmatprep.subr.mxu0 0.0
        %308 = vmatpush1.msra.mxu0 %v289
        %309 = vmatprep.subr.mxu0 0.0
        %310 = vmatpush1.msra.mxu0 %v290
        %311 = vmatprep.subr.mxu0 0.0
        %312 = vmatpush1.msra.mxu0 0.0
        %313 = vmatprep.subr.mxu0 0.0
        %314 = vmatpush1.msra.mxu0 0.0
        %315 = vmatprep.subr.mxu0 0.0
        %316 = vmatpush1.msra.mxu0 0.0
        %317 = vmatprep.subr.mxu0 0.0
        %318 = vmatpush1.msra.mxu0 0.0
        %319 = vmatprep.subr.mxu0 0.0
        %320 = vmatpush1.msra.mxu0 0.0
        %321 = vmatprep.subr.mxu0 0.0
        %322 = vmatpush1.msra.mxu0 0.0
        %323 = vmatprep.subr.mxu0 0.0
        %324 = vmatpush1.msra.mxu0 0.0
        %325 = vmatprep.subr.mxu0 0.0
        %326 = vmatpush1.msra.mxu0 0.0
        %327 = vmatprep.subr.mxu0 0.0
        %328 = vmatpush1.msra.mxu0 0.0
        %329 = vmatprep.subr.mxu0 0.0
        %330 = vmatpush1.msra.mxu0 0.0
        %331 = vmatprep.subr.mxu0 0.0
        %332 = vmatpush1.msra.mxu0 0.0
        %333 = vmatprep.subr.mxu0 0.0
        %334 = vmatpush1.msra.mxu0 0.0
        %335 = vmatprep.subr.mxu0 0.0
        %336 = vmatpush1.msra.mxu0 0.0
        %337 = vmatprep.subr.mxu0 0.0
        %338 = vmatpush1.msra.mxu0 0.0
        %339 = vmatprep.subr.mxu0 0.0
        %340 = vmatpush1.msra.mxu0 0.0
        %341 = vmatprep.subr.mxu0 0.0
        %342 = vmatpush1.msra.mxu0 0.0
        %343 = vmatprep.subr.mxu0 0.0
        %344 = vmatpush1.msra.mxu0 0.0
        %345 = vmatprep.subr.mxu0 0.0
        %346 = vmatpush1.msra.mxu0 0.0
        %347 = vmatprep.subr.mxu0 0.0
        %348 = vmatpush1.msra.mxu0 0.0
        %349 = vmatprep.subr.mxu0 0.0
        %350 = vmatpush1.msra.mxu0 0.0
        %351 = vmatprep.subr.mxu0 0.0
        %352 = vmatpush1.msra.mxu0 0.0
        %353 = vmatprep.subr.mxu0 0.0
        %354 = vmatpush1.msra.mxu0 0.0
        %355 = vmatprep.subr.mxu0 0.0
        %356 = vmatpush1.msra.mxu0 0.0
        %357 = vmatprep.subr.mxu0 0.0
        %358 = vmatpush1.msra.mxu0 0.0
        %359 = vmatprep.mubr.f32.mxu0 0.0
        %360 = vmatmul.mubr.f32.gmra.mrb[0].mxu0 %v293
        %v361 = vpop.f32.mrb[0].mxu0
        %v362 = vadd.f32 0.0, %v361
        %v363 = vpop.f32.mrb[0].mxu0
        %364 = vdwg.mxu0
        %365 = vst [vmem:[%s202] sm:$0xff] %v362
        %p366 = scmp.lt.s32.totalorder %s18, 1
        %s367 = scalar_select %p366, %s18, 1
        %s368 = smul.addr %s367, 8
        %s369 = scalar_lea.vmem %s3, %s368
        // Predicated region
        $region41: #{prompter_forward.1} parent=31 // pred_check
          %p370 = pneg %p104
        $region42: #{prompter_forward.1} parent=31 // pred_check_branch
          %372 = sbr.rel (%p370) target = $region44
        $region43: #{prompter_forward.1} parent=31 // pred_region
          _
        $region44: #{prompter_forward.1} parent=31 // pred_fallthru
          _
      $region32: #{prompter_forward.1} parent=5 // pred_fallthru
        _
      %p373 = scmp.le.s32.totalorder 2, %s13
      // Predicated region
      $region45: #{prompter_forward.1} parent=5 // pred_check
        %p374 = pneg %p373
      $region46: #{prompter_forward.1} parent=5 // pred_check_branch
        %376 = sbr.rel (%p374) target = $region48
      $region47: #{prompter_forward.1} parent=5 // pred_region
        %s377 = ssub.s32 %s13, 2
        // Predicated region
        $region49: #{prompter_forward.1} parent=47 // pred_check
          %p378 = pneg %p110
        $region50: #{prompter_forward.1} parent=47 // pred_check_branch
          %380 = sbr.rel (%p378) target = $region52
        $region51: #{prompter_forward.1} parent=47 // pred_region
          %p381 = scmp.lt.s32.totalorder %s19, 1
          %s382 = scalar_select %p381, %s19, 1
          %s383 = smul.addr %s382, 8
          %s384 = scalar_lea.vmem %s3, %s383
        $region52: #{prompter_forward.1} parent=47 // pred_fallthru
          _
      $region48: #{prompter_forward.1} parent=5 // pred_fallthru
        _
    $region6: #{prompter_forward.1} parent=1 // loop_footer
      %s17 = sadd.s32 1, %s13
    $region7: #{prompter_forward.1} parent=1 // loop_footer_branch
      %12 = sbr.rel target = $region3
    $region8: #{prompter_forward.1} parent=1 // loop_exit
      _
    %385 = vsyncpa [#allocation3], 1
    %s386 = scalar_lea.sflag [#allocation3], 1
    %387 = vsyncpa %s386, 1
    %388 = vsyncpa [#allocation5], 1
    %s389 = scalar_lea.sflag [#allocation5], 1
    %390 = vsyncpa %s389, 1

</llo_original>
